<compile_context>
chip_gen: v6e
topology: v6e:2x2x1
jax: 0.10.0
libtpu: 0.0.40
codegen_flags: <defaults>
</compile_context>

<pallas_src>
import functools
import math

import jax
import jax.numpy as jnp
from jax.experimental import pallas as pl
from jax.experimental.pallas import tpu as pltpu


# Per-tile byte budget (f32 working set) and scoped-VMEM limit. Sized so that
# double-buffered input + output tiles plus f32 intermediates stay well under
# the 48 MiB limit, which itself fits every generation (v5e/v6e: 128 MiB
# physical VMEM, v7x: 64 MiB physical per TensorCore).
_TILE_BUDGET_BYTES = 4 << 20
_VMEM_LIMIT_BYTES = 48 << 20


# ---------------------------------------------------------------------------
# Tile-size selection
# ---------------------------------------------------------------------------

def _pick_tile_rows(R, C, budget_bytes=_TILE_BUDGET_BYTES, max_rows=1024):
    """Rows per block for the (R, C) channels_last layout (multiple of 8)."""
    if R <= 8:
        return R
    rows = max(8, budget_bytes // max(1, C * 4))   # size against f32 working set
    rows = min(rows, max_rows, R)
    rows = max(8, (rows // 8) * 8)                 # sublane multiple
    return rows


def _pick_tile_t(T, C, budget_bytes=_TILE_BUDGET_BYTES, max_t=2048):
    """T (lane) extent per block for the (B, C, T) channels_first layout."""
    t = budget_bytes // max(1, C * 4)
    t = min(t, max_t)
    if t >= T or T <= 128:
        return T                                   # whole axis fits -> full block
    t = max(128, (t // 128) * 128)                 # lane multiple, >= one full vreg row
    return min(t, T)


# ---------------------------------------------------------------------------
# Kernels
# ---------------------------------------------------------------------------

def _ln_channels_last_kernel(x_ref, w_ref, b_ref, o_ref, *, eps, c_inv):
    # x block: (tile_rows, C); normalize over the last (lane) axis.
    x = x_ref[...].astype(jnp.float32)
    s1 = jnp.sum(x, axis=-1, keepdims=True)
    s2 = jnp.sum(x * x, axis=-1, keepdims=True)
    mean = s1 * c_inv
    var = jnp.maximum(s2 * c_inv - mean * mean, 0.0)   # biased variance, clamped
    xn = (x - mean) * jax.lax.rsqrt(var + eps)
    # w_ref / b_ref are pre-cast f32 with shape (1, C) -> broadcast over rows.
    o_ref[...] = (xn * w_ref[...] + b_ref[...]).astype(o_ref.dtype)


def _ln_channels_first_kernel(x_ref, w_ref, b_ref, o_ref, *, eps, c_inv):
    # x block: (1, C, tile_T); normalize over the channel (sublane) axis.
    x = x_ref[...].astype(jnp.float32)
    s1 = jnp.sum(x, axis=1, keepdims=True)
    s2 = jnp.sum(x * x, axis=1, keepdims=True)
    u = s1 * c_inv
    var = jnp.maximum(s2 * c_inv - u * u, 0.0)
    xn = (x - u) * jax.lax.rsqrt(var + eps)
    # w_ref / b_ref are pre-cast f32 with shape (1, C, 1).
    o_ref[...] = (w_ref[...] * xn + b_ref[...]).astype(o_ref.dtype)


# ---------------------------------------------------------------------------
# Wrapper (glue: reshapes / parameter broadcasting done in plain JAX)
# ---------------------------------------------------------------------------

def layer_norm(x, weight, bias, *, eps=1e-6, data_format="channels_last",
               mask=None, tile_rows=None, tile_t=None):
    if data_format == "channels_last":
        # layout: (..., C) flattened to (R, C); grid tiles rows with cdiv
        # (partial last block is harmless: reduction is only over C, and
        # out-of-range rows are masked on writeback).
        C = x.shape[-1]
        R = math.prod(x.shape[:-1]) if x.ndim > 1 else 1
        x2 = x.reshape(R, C)
        w2 = weight.astype(jnp.float32).reshape(1, C)
        b2 = bias.astype(jnp.float32).reshape(1, C)
        if tile_rows is None:
            tile_rows = _pick_tile_rows(R, C)
        out = pl.pallas_call(
            functools.partial(_ln_channels_last_kernel, eps=eps, c_inv=1.0 / C),
            out_shape=jax.ShapeDtypeStruct((R, C), x.dtype),
            grid=(pl.cdiv(R, tile_rows),),
            in_specs=[
                pl.BlockSpec((tile_rows, C), lambda i: (i, 0)),
                pl.BlockSpec((1, C), lambda i: (0, 0)),
                pl.BlockSpec((1, C), lambda i: (0, 0)),
            ],
            out_specs=pl.BlockSpec((tile_rows, C), lambda i: (i, 0)),
            compiler_params=pltpu.CompilerParams(
                dimension_semantics=("parallel",),
                vmem_limit_bytes=_VMEM_LIMIT_BYTES,
            ),
        )(x2, w2, b2)
        out = out.reshape(x.shape)

    elif data_format == "channels_first":
        # layout: (B, C, T); grid over (batch, T tiles); each block is (1, C, tile_T)
        # so the channel reduction stays inside a single block (cheap sublane reduce).
        B, C, T = x.shape
        w3 = weight.astype(jnp.float32).reshape(1, C, 1)
        b3 = bias.astype(jnp.float32).reshape(1, C, 1)
        if tile_t is None:
            tile_t = _pick_tile_t(T, C)
        out = pl.pallas_call(
            functools.partial(_ln_channels_first_kernel, eps=eps, c_inv=1.0 / C),
            out_shape=jax.ShapeDtypeStruct((B, C, T), x.dtype),
            grid=(B, pl.cdiv(T, tile_t)),
            in_specs=[
                pl.BlockSpec((1, C, tile_t), lambda b, t: (b, 0, t)),
                pl.BlockSpec((1, C, 1), lambda b, t: (0, 0, 0)),
                pl.BlockSpec((1, C, 1), lambda b, t: (0, 0, 0)),
            ],
            out_specs=pl.BlockSpec((1, C, tile_t), lambda b, t: (b, 0, t)),
            compiler_params=pltpu.CompilerParams(
                dimension_semantics=("parallel", "parallel"),
                vmem_limit_bytes=_VMEM_LIMIT_BYTES,
            ),
        )(x, w3, b3)
    else:
        raise NotImplementedError(data_format)

    if mask is None:
        return out
    return out, mask  # mask passes through untouched, matching the torch module


# ---------------------------------------------------------------------------
# Pure-JAX references (for correctness check)
# ---------------------------------------------------------------------------

def _ref_channels_last(x, w, b, eps):
    x32 = x.astype(jnp.float32)
    u = jnp.mean(x32, axis=-1, keepdims=True)
    s = jnp.mean((x32 - u) ** 2, axis=-1, keepdims=True)
    return ((x32 - u) / jnp.sqrt(s + eps) * w + b).astype(x.dtype)


def _ref_channels_first(x, w, b, eps):
    x32 = x.astype(jnp.float32)
    u = jnp.mean(x32, axis=1, keepdims=True)
    s = jnp.mean((x32 - u) ** 2, axis=1, keepdims=True)
    xn = (x32 - u) / jnp.sqrt(s + eps)
    return (w[None, :, None] * xn + b[None, :, None]).astype(x.dtype)


if __name__ == "__main__":
    key = jax.random.PRNGKey(0)
    k1, k2, k3 = jax.random.split(key, 3)

    C = 32
    eps = 1e-6
    # Parameters initialized per the module's __init__ (ones / zeros).
    weight = jnp.ones((C,), dtype=jnp.float32)
    bias = jnp.zeros((C,), dtype=jnp.float32)

    # channels_last: (batch=2, seq=8, hidden=32)
    x_last = jax.random.normal(k1, (2, 8, C), dtype=jnp.float32)
    y_last = layer_norm(x_last, weight, bias, eps=eps, data_format="channels_last")
    y_last = jax.block_until_ready(y_last)

    # channels_last with a row count that is NOT a multiple of the tile
    # (exercises the cdiv grid / partial last block path): (3, 5, 32) -> R = 15
    x_odd = jax.random.normal(k3, (3, 5, C), dtype=jnp.float32)
    y_odd = layer_norm(x_odd, weight, bias, eps=eps, data_format="channels_last")
    y_odd = jax.block_until_ready(y_odd)

    # channels_first: (batch=2, channels=32, seq=8)
    x_first = jax.random.normal(k2, (2, C, 8), dtype=jnp.float32)
    y_first = layer_norm(x_first, weight, bias, eps=eps, data_format="channels_first")
    y_first = jax.block_until_ready(y_first)

    # mask pass-through path
    mask = jnp.ones((2, 8), dtype=jnp.bool_)
    y_masked, mask_out = layer_norm(x_last, weight, bias, eps=eps,
                                    data_format="channels_last", mask=mask)
    jax.block_until_ready(y_masked)

    # Correctness checks against pure-JAX references.
    ref_last = _ref_channels_last(x_last, weight, bias, eps)
    ref_odd = _ref_channels_last(x_odd, weight, bias, eps)
    ref_first = _ref_channels_first(x_first, weight, bias, eps)
    assert jnp.allclose(y_last, ref_last, atol=1e-5, rtol=1e-5)
    assert jnp.allclose(y_odd, ref_odd, atol=1e-5, rtol=1e-5)
    assert jnp.allclose(y_first, ref_first, atol=1e-5, rtol=1e-5)
    assert jnp.allclose(y_masked, ref_last, atol=1e-5, rtol=1e-5)
    assert bool(jnp.all(mask_out == mask))

    print("KERNEL_OK")
</pallas_src>

<mosaic_0001>
module attributes {stable_mosaic.version = 11 : i64} {
  func.func @_ln_channels_last_kernel(%arg0: i32, %arg1: memref<16x32xf32, #tpu.memory_space<vmem>>, %arg2: memref<1x32xf32, #tpu.memory_space<vmem>>, %arg3: memref<1x32xf32, #tpu.memory_space<vmem>>, %arg4: memref<16x32xf32, #tpu.memory_space<vmem>>) attributes {dimension_semantics = [#tpu.dimension_semantics<parallel>], iteration_bounds = array<i64: 1>, scalar_prefetch = 0 : i64, scratch_operands = 0 : i64, tpu.core_type = #tpu.core_type<tc>, window_params = [{transform_indices = @transform_0, window_bounds = array<i64: 16, 32>}, {pipeline_mode = #tpu.pipeline_mode<synchronous>, transform_indices = @transform_1, window_bounds = array<i64: 1, 32>}, {pipeline_mode = #tpu.pipeline_mode<synchronous>, transform_indices = @transform_2, window_bounds = array<i64: 1, 32>}, {transform_indices = @transform_3, window_bounds = array<i64: 16, 32>}]} {
    %c0 = arith.constant 0 : index
    %c0_0 = arith.constant 0 : index
    %0 = vector.load %arg1[%c0, %c0_0] : memref<16x32xf32, #tpu.memory_space<vmem>>, vector<16x32xf32>
    %cst = arith.constant dense<0.000000e+00> : vector<16xf32>
    %1 = vector.multi_reduction <add>, %0, %cst [1] : vector<16x32xf32> to vector<16xf32>
    %2 = vector.shape_cast %1 : vector<16xf32> to vector<16x1xf32>
    %3 = arith.mulf %0, %0 : vector<16x32xf32>
    %cst_1 = arith.constant dense<0.000000e+00> : vector<16xf32>
    %4 = vector.multi_reduction <add>, %3, %cst_1 [1] : vector<16x32xf32> to vector<16xf32>
    %5 = vector.shape_cast %4 : vector<16xf32> to vector<16x1xf32>
    %cst_2 = arith.constant 3.125000e-02 : f32
    %6 = vector.broadcast %cst_2 : f32 to vector<16x1xf32>
    %7 = arith.mulf %2, %6 : vector<16x1xf32>
    %cst_3 = arith.constant 3.125000e-02 : f32
    %8 = vector.broadcast %cst_3 : f32 to vector<16x1xf32>
    %9 = arith.mulf %5, %8 : vector<16x1xf32>
    %10 = arith.mulf %7, %7 : vector<16x1xf32>
    %11 = arith.subf %9, %10 : vector<16x1xf32>
    %cst_4 = arith.constant 0.000000e+00 : f32
    %12 = vector.broadcast %cst_4 : f32 to vector<16x1xf32>
    %13 = arith.maximumf %11, %12 : vector<16x1xf32>
    %14 = vector.broadcast %7 : vector<16x1xf32> to vector<16x32xf32>
    %15 = arith.subf %0, %14 : vector<16x32xf32>
    %cst_5 = arith.constant 9.99999997E-7 : f32
    %16 = vector.broadcast %cst_5 : f32 to vector<16x1xf32>
    %17 = arith.addf %13, %16 : vector<16x1xf32>
    %18 = math.rsqrt %17 : vector<16x1xf32>
    %19 = vector.broadcast %18 : vector<16x1xf32> to vector<16x32xf32>
    %20 = arith.mulf %15, %19 : vector<16x32xf32>
    %c0_6 = arith.constant 0 : index
    %c0_7 = arith.constant 0 : index
    %21 = vector.load %arg2[%c0_6, %c0_7] : memref<1x32xf32, #tpu.memory_space<vmem>>, vector<1x32xf32>
    %22 = vector.broadcast %21 : vector<1x32xf32> to vector<16x32xf32>
    %23 = arith.mulf %20, %22 : vector<16x32xf32>
    %c0_8 = arith.constant 0 : index
    %c0_9 = arith.constant 0 : index
    %24 = vector.load %arg3[%c0_8, %c0_9] : memref<1x32xf32, #tpu.memory_space<vmem>>, vector<1x32xf32>
    %25 = vector.broadcast %24 : vector<1x32xf32> to vector<16x32xf32>
    %26 = arith.addf %23, %25 : vector<16x32xf32>
    %c0_10 = arith.constant 0 : index
    %c0_11 = arith.constant 0 : index
    %27 = vector.load %arg4[%c0_10, %c0_11] : memref<16x32xf32, #tpu.memory_space<vmem>>, vector<16x32xf32>
    tpu.vector_store %arg4[%c0_10, %c0_11], %26 {strides = array<i32>} : memref<16x32xf32, #tpu.memory_space<vmem>>, vector<16x32xf32>,
    return
  }
  func.func @transform_0(%arg0: i32) -> (i32, i32) {
    %c0_i32 = arith.constant 0 : i32
    %c0_i32_0 = arith.constant 0 : i32
    return %arg0, %c0_i32 : i32, i32
  }
  func.func @transform_1(%arg0: i32) -> (i32, i32) {
    %c0_i32 = arith.constant 0 : i32
    %c0_i32_0 = arith.constant 0 : i32
    %c0_i32_1 = arith.constant 0 : i32
    return %c0_i32, %c0_i32_0 : i32, i32
  }
  func.func @transform_2(%arg0: i32) -> (i32, i32) {
    %c0_i32 = arith.constant 0 : i32
    %c0_i32_0 = arith.constant 0 : i32
    %c0_i32_1 = arith.constant 0 : i32
    return %c0_i32, %c0_i32_0 : i32, i32
  }
  func.func @transform_3(%arg0: i32) -> (i32, i32) {
    %c0_i32 = arith.constant 0 : i32
    %c0_i32_0 = arith.constant 0 : i32
    return %arg0, %c0_i32 : i32, i32
  }
}

</mosaic_0001>

<llo_original>
// kernel: tpu_custom_call.1
$region0: #{tpu_custom_call.1}
  #allocation0 [shape = 'u32[]', space=smem, size = 0x4, offset = 0x4, fixed_abs, tag = 'smem constant byte address 0x4 - core index']
  #allocation1 [shape = 'u32[144,128]{1,0:T(1,128)}', space=vmem, size = 0x12000, scoped, tag = 'internal scratch']
  %s0 = inlined_call_operand.hbm [shape: f32[16,32], index: 0, kind: input, shape index: {}]
  %s1 = inlined_call_operand.vmem [shape: f32[1,32], index: 1, kind: input, shape index: {}]
  %s2 = inlined_call_operand.vmem [shape: f32[1,32], index: 2, kind: input, shape index: {}]
  %s3 = inlined_call_operand.hbm [shape: f32[16,32], index: 3, kind: output, shape index: {}]
  %s4 = sld [smem:[#allocation0]]
  $region26: #{tpu_custom_call.1} parent=0
    _
  %s6 = ssub.s32 1, %s4
  %s7 = scalar_select 0, %s6, %s4
  $region1: #{tpu_custom_call.1} parent=0
    #allocation2 [shape = 'u8[8192]{0}', space=vmem, size = 0x2000, scoped, tag = 'input window, operand 0, single buffered']
    #allocation3 [shape = 's32[1]{0}', space=sflag, size = 0x4, scoped, tag = 'scoped memory for tpu_custom_call.1']
    #allocation4 [shape = 's32[1]{0}', space=sflag, size = 0x4, scoped, tag = 'scoped memory for tpu_custom_call.1']
    #allocation5 [shape = 'u8[8192]{0}', space=vmem, size = 0x2000, scoped, tag = 'output window, operand 0, single buffered']
    %8 = vsyncpa [#allocation3], 0
    %9 = vsyncpa [#allocation4], 0
    // Predicated region
    $region2: #{tpu_custom_call.1} parent=1 // pred_check
      _
    $region3: #{tpu_custom_call.1} parent=1 // pred_check_branch
      %11 = sbr.rel (0) target = $region5
    $region4: #{tpu_custom_call.1} parent=1 // pred_region
      %s13 = ssub.s32 256, 256
      %14 = vsyncadd [#allocation3], %s13
      %s15 = sshll.u32 [#allocation2], 4
      %s16 = int_to_ptr.vmem [resolvable:$true] %s15
      %21 = dma.hbm_to_vmem [thread:$0]  %s0, 256, %s16, [#allocation3], 128, 128, 8
    $region5: #{tpu_custom_call.1} parent=1 // pred_fallthru
      _
    // Predicated region
    $region6: #{tpu_custom_call.1} parent=1 // pred_check
      _
    $region7: #{tpu_custom_call.1} parent=1 // pred_check_branch
      %23 = sbr.rel (0) target = $region9
    $region8: #{tpu_custom_call.1} parent=1 // pred_region
      _
    $region9: #{tpu_custom_call.1} parent=1 // pred_fallthru
      _
    // Predicated region
    $region10: #{tpu_custom_call.1} parent=1 // pred_check
      _
    $region11: #{tpu_custom_call.1} parent=1 // pred_check_branch
      %25 = sbr.rel (0) target = $region13
    $region12: #{tpu_custom_call.1} parent=1 // pred_region
      _
    $region13: #{tpu_custom_call.1} parent=1 // pred_fallthru
      _
    // Predicated region
    $region14: #{tpu_custom_call.1} parent=1 // pred_check
      _
    $region15: #{tpu_custom_call.1} parent=1 // pred_check_branch
      %27 = sbr.rel (0) target = $region17
    $region16: #{tpu_custom_call.1} parent=1 // pred_region
      %28 = dma.done [#allocation3], 256
    $region17: #{tpu_custom_call.1} parent=1 // pred_fallthru
      _
    %v29 = vld [vmem:[#allocation2] sm:$0xff]
    %v30 = vld [vmem:[#allocation2 + $0x8] sm:$0xff]
    %vm31 = vcmask 261120
    %v32 = vsel %vm31, %v29, 0.0
    %33 = vadd.xlane.f32.xlu0 %v32
    %v34 = vpop.xlane.xlu0 %33
    %v35 = vsel %vm31, %v30, 0.0
    %36 = vadd.xlane.f32.xlu0 %v35
    %v37 = vpop.xlane.xlu0 %36
    %v38 = vmul.f32 %v29, %v29
    %v39 = vmul.f32 %v30, %v30
    %v40 = vsel %vm31, %v38, 0.0
    %41 = vadd.xlane.f32.xlu0 %v40
    %v42 = vpop.xlane.xlu0 %41
    %v43 = vsel %vm31, %v39, 0.0
    %44 = vadd.xlane.f32.xlu0 %v43
    %v45 = vpop.xlane.xlu0 %44
    %v46 = vmul.f32 %v34, 0.03125
    %v47 = vmul.f32 %v37, 0.03125
    %v48 = vmul.f32 %v42, 0.03125
    %v49 = vmul.f32 %v45, 0.03125
    %v50 = vmul.f32 %v46, %v46
    %v51 = vmul.f32 %v47, %v47
    %v52 = vsub.f32 %v48, %v50
    %v53 = vsub.f32 %v49, %v51
    %v54 = vmax.f32 %v52, 0.0
    %v55 = vmax.f32 %v53, 0.0
    %v56 = vsub.f32 %v29, %v46
    %v57 = vsub.f32 %v30, %v47
    %v58 = vadd.f32 %v54, 1e-06
    %v59 = vadd.f32 %v55, 1e-06
    %v60 = vrsqrt.pop %v58
    %v61 = vrsqrt.pop %v59
    %v62 = vmul.f32 %v56, %v60
    %v63 = vmul.f32 %v57, %v61
    %v64 = vld [vmem:[%s1] sm:$0x1]
    %v66 = vlaneseq
    %v67 = vshrl.u32 %v66, 7
    %v68 = vsub.s32 0, %v67
    %v69 = vrot.slane %v64, %v68
    %v71 = vmul.f32 %v62, %v69
    %v72 = vmul.f32 %v63, %v69
    %v73 = vld [vmem:[%s2] sm:$0x1]
    %v75 = vlaneseq
    %v76 = vshrl.u32 %v75, 7
    %v77 = vsub.s32 0, %v76
    %v78 = vrot.slane %v73, %v77
    %v80 = vadd.f32 %v71, %v78
    %v81 = vadd.f32 %v72, %v78
    %82 = vst.msk [vmem:[#allocation5] sm:$0xff] %vm31, %v80
    %83 = vst.msk [vmem:[#allocation5 + $0x8] sm:$0xff] %vm31, %v81
    // Predicated region
    $region18: #{tpu_custom_call.1} parent=1 // pred_check
      _
    $region19: #{tpu_custom_call.1} parent=1 // pred_check_branch
      %85 = sbr.rel (0) target = $region21
    $region20: #{tpu_custom_call.1} parent=1 // pred_region
      %s87 = ssub.s32 256, 256
      %88 = vsyncadd [#allocation4], %s87
      %s89 = sshll.u32 [#allocation5], 4
      %s90 = int_to_ptr.vmem [resolvable:$true] %s89
      %95 = dma.vmem_to_hbm [thread:$0]  %s90, 256, %s3, [#allocation4], 128, 128, 8
    $region21: #{tpu_custom_call.1} parent=1 // pred_fallthru
      _
    // Predicated region
    $region22: #{tpu_custom_call.1} parent=1 // pred_check
      _
    $region23: #{tpu_custom_call.1} parent=1 // pred_check_branch
      %97 = sbr.rel (0) target = $region25
    $region24: #{tpu_custom_call.1} parent=1 // pred_region
      %98 = dma.done [#allocation4], 256
    $region25: #{tpu_custom_call.1} parent=1 // pred_fallthru
      _
    %99 = vsyncpa [#allocation3], 1
    %100 = vsyncpa [#allocation4], 1

</llo_original>
